<compile_context>
chip_gen: v7x
topology: tpu7x:2x2x1
jax: 0.10.0
libtpu: 0.0.40
codegen_flags: <defaults>
</compile_context>

<pallas_src>
import jax
import jax.numpy as jnp
from jax.experimental import pallas as pl
from jax.experimental.pallas import tpu as pltpu


def _decaying_sine_plus_line_kernel(coeff_ref, x_ref, o_ref):
    # coeff_ref: SMEM (7,) float32 -> [a, b, c, x0, x1, t, d]
    a = coeff_ref[0]
    b = coeff_ref[1]
    c = coeff_ref[2]
    x0 = coeff_ref[3]
    x1 = coeff_ref[4]
    t = coeff_ref[5]
    d = coeff_ref[6]
    neg_t = -t  # scalar prework stays on the scalar unit

    x = x_ref[...].astype(jnp.float32)
    y = a * jnp.sin(b * (x - x0)) * jnp.exp(neg_t * jnp.abs(x - x1)) + c * x + d
    o_ref[...] = y.astype(o_ref.dtype)


def decaying_sine_plus_line(coefficients, X, *, max_block_bytes=2 * 1024 * 1024):
    """Apply y = a*sin(b*(X-x0))*exp(-t|X-x1|) + c*X + d elementwise.

    coefficients: (7,) float32 array [a, b, c, x0, x1, t, d]
    X: arbitrary-shape array (shape preserved; floats keep dtype, ints -> f32).
    """
    orig_shape = X.shape

    if jnp.issubdtype(X.dtype, jnp.floating):
        io_dtype = X.dtype
    else:
        # torch promotes integer inputs to float for these ops
        io_dtype = jnp.float32
        X = X.astype(jnp.float32)

    x = X.reshape(-1)
    n = int(x.shape[0])

    # --- choose a lane-dense layout; prefer widths that divide n (no pad copy)
    cols = None
    for cand in (2048, 1024, 512, 256, 128):
        if n % cand == 0:
            cols = cand
            break
    padded = cols is None
    if padded:
        cols = 512
        rows = -(-n // cols)                   # ceil div
        x = jnp.pad(x, (0, rows * cols - n))   # pads fewer than `cols` elems
    else:
        rows = n // cols

    x2d = x.reshape(rows, cols)

    # --- block sizing: ~max_block_bytes per block, rows a multiple of 8.
    bytes_per_row = cols * jnp.dtype(io_dtype).itemsize
    tile_rows = max(8, min(1024, (max_block_bytes // bytes_per_row) // 8 * 8))
    if rows < tile_rows:
        # Small input: one block spanning the full row extent (allowed even
        # when rows is not a multiple of 8, since it equals the array dim).
        tile_rows = rows

    grid = (pl.cdiv(rows, tile_rows),)

    out2d = pl.pallas_call(
        _decaying_sine_plus_line_kernel,
        out_shape=jax.ShapeDtypeStruct((rows, cols), io_dtype),
        grid_spec=pl.GridSpec(
            grid=grid,
            in_specs=[
                pl.BlockSpec(memory_space=pltpu.SMEM),               # coefficients
                pl.BlockSpec((tile_rows, cols), lambda i: (i, 0)),   # X tile
            ],
            out_specs=pl.BlockSpec((tile_rows, cols), lambda i: (i, 0)),
        ),
        compiler_params=pltpu.CompilerParams(
            dimension_semantics=("parallel",)
        ),
    )(coefficients.astype(jnp.float32), x2d)

    out_flat = out2d.reshape(-1)
    if padded:
        out_flat = out_flat[:n]
    return out_flat.reshape(orig_shape)


def _reference(coefficients, X):
    a, b, c, x0, x1, t, d = [coefficients[i] for i in range(7)]
    Xf = X.astype(jnp.float32)
    return a * jnp.sin(b * (Xf - x0)) * jnp.exp(-t * jnp.abs(Xf - x1)) + c * Xf + d


if __name__ == "__main__":
    key = jax.random.PRNGKey(0)
    k_coeff, k1, k2, k3 = jax.random.split(key, 4)

    # Deterministic init matching torch.distributions.Uniform(0, 0.1).sample((7,))
    coefficients = jax.random.uniform(
        k_coeff, (7,), minval=0.0, maxval=0.1, dtype=jnp.float32
    )

    # Small example consistent with the module (elementwise over X).
    X_small = jax.random.normal(k1, (2, 4, 16, 16), dtype=jnp.float32) * 3.0
    # Awkward size -> exercises the (tiny) pad fallback path.
    X_odd = jax.random.normal(k2, (3, 515), dtype=jnp.float32) * 3.0
    # Moderate size -> exercises multi-step grid + partial edge block.
    X_big = jax.random.normal(k3, (1100, 1024), dtype=jnp.float32) * 3.0

    ok = True
    for X in (X_small, X_odd, X_big):
        y = jax.block_until_ready(decaying_sine_plus_line(coefficients, X))
        y_ref = _reference(coefficients, X)
        ok &= y.shape == X.shape
        ok &= bool(jnp.allclose(y, y_ref, atol=1e-5, rtol=1e-5))

    assert ok
    print("KERNEL_OK")
</pallas_src>

<mosaic_0001>
module attributes {stable_mosaic.version = 11 : i64} {
  func.func @_decaying_sine_plus_line_kernel(%arg0: i32, %arg1: memref<7xf32, #tpu.memory_space<smem>>, %arg2: memref<1x2048xf32, #tpu.memory_space<vmem>>, %arg3: memref<1x2048xf32, #tpu.memory_space<vmem>>) attributes {dimension_semantics = [#tpu.dimension_semantics<parallel>], iteration_bounds = array<i64: 1>, scalar_prefetch = 0 : i64, scratch_operands = 0 : i64, tpu.core_type = #tpu.core_type<tc>, window_params = [{transform_indices = @transform_0, window_bounds = array<i64: 7>}, {transform_indices = @transform_1, window_bounds = array<i64: 1, 2048>}, {transform_indices = @transform_2, window_bounds = array<i64: 1, 2048>}]} {
    %c0 = arith.constant 0 : index
    %0 = memref.load %arg1[%c0] : memref<7xf32, #tpu.memory_space<smem>>
    %c1 = arith.constant 1 : index
    %1 = memref.load %arg1[%c1] : memref<7xf32, #tpu.memory_space<smem>>
    %c2 = arith.constant 2 : index
    %2 = memref.load %arg1[%c2] : memref<7xf32, #tpu.memory_space<smem>>
    %c3 = arith.constant 3 : index
    %3 = memref.load %arg1[%c3] : memref<7xf32, #tpu.memory_space<smem>>
    %c4 = arith.constant 4 : index
    %4 = memref.load %arg1[%c4] : memref<7xf32, #tpu.memory_space<smem>>
    %c5 = arith.constant 5 : index
    %5 = memref.load %arg1[%c5] : memref<7xf32, #tpu.memory_space<smem>>
    %c6 = arith.constant 6 : index
    %6 = memref.load %arg1[%c6] : memref<7xf32, #tpu.memory_space<smem>>
    %cst = arith.constant 0.000000e+00 : f32
    %7 = arith.subf %cst, %5 : f32
    %c0_0 = arith.constant 0 : index
    %c0_1 = arith.constant 0 : index
    %8 = vector.load %arg2[%c0_0, %c0_1] : memref<1x2048xf32, #tpu.memory_space<vmem>>, vector<1x2048xf32>
    %9 = vector.broadcast %3 : f32 to vector<1x2048xf32>
    %10 = arith.subf %8, %9 : vector<1x2048xf32>
    %11 = vector.broadcast %1 : f32 to vector<1x2048xf32>
    %12 = arith.mulf %11, %10 : vector<1x2048xf32>
    %13 = math.sin %12 : vector<1x2048xf32>
    %14 = vector.broadcast %0 : f32 to vector<1x2048xf32>
    %15 = arith.mulf %14, %13 : vector<1x2048xf32>
    %16 = vector.broadcast %4 : f32 to vector<1x2048xf32>
    %17 = arith.subf %8, %16 : vector<1x2048xf32>
    %18 = math.absf %17 : vector<1x2048xf32>
    %19 = vector.broadcast %7 : f32 to vector<1x2048xf32>
    %20 = arith.mulf %19, %18 : vector<1x2048xf32>
    %21 = math.exp %20 : vector<1x2048xf32>
    %22 = arith.mulf %15, %21 : vector<1x2048xf32>
    %23 = vector.broadcast %2 : f32 to vector<1x2048xf32>
    %24 = arith.mulf %23, %8 : vector<1x2048xf32>
    %25 = arith.addf %22, %24 : vector<1x2048xf32>
    %26 = vector.broadcast %6 : f32 to vector<1x2048xf32>
    %27 = arith.addf %25, %26 : vector<1x2048xf32>
    %c0_2 = arith.constant 0 : index
    %c0_3 = arith.constant 0 : index
    %28 = vector.load %arg3[%c0_2, %c0_3] : memref<1x2048xf32, #tpu.memory_space<vmem>>, vector<1x2048xf32>
    tpu.vector_store %arg3[%c0_2, %c0_3], %27 {strides = array<i32>} : memref<1x2048xf32, #tpu.memory_space<vmem>>, vector<1x2048xf32>,
    return
  }
  func.func @transform_0(%arg0: i32) -> i32 {
    %c0_i32 = arith.constant 0 : i32
    %c0_i32_0 = arith.constant 0 : i32
    return %c0_i32 : i32
  }
  func.func @transform_1(%arg0: i32) -> (i32, i32) {
    %c0_i32 = arith.constant 0 : i32
    %c0_i32_0 = arith.constant 0 : i32
    return %arg0, %c0_i32 : i32, i32
  }
  func.func @transform_2(%arg0: i32) -> (i32, i32) {
    %c0_i32 = arith.constant 0 : i32
    %c0_i32_0 = arith.constant 0 : i32
    return %arg0, %c0_i32 : i32, i32
  }
}

</mosaic_0001>

<llo_original>
// kernel: tpu_custom_call.1
$region0: #{tpu_custom_call.1}
  #allocation0 [shape = 'u32[]', space=smem, size = 0x4, offset = 0x4, fixed_abs, tag = 'smem constant byte address 0x4 - core index']
  #allocation1 [shape = 'u32[144,128]{1,0:T(1,128)}', space=vmem, size = 0x12000, scoped, tag = 'internal scratch']
  %s0 = inlined_call_operand.hbm [shape: f32[7], index: 0, kind: input, shape index: {}]
  %s1 = inlined_call_operand.hbm [shape: f32[1,2048], index: 1, kind: input, shape index: {}]
  %s2 = inlined_call_operand.hbm [shape: f32[1,2048], index: 2, kind: output, shape index: {}]
  %s3 = sld [smem:[#allocation0]]
  $region26: #{tpu_custom_call.1} parent=0
    _
  %s5 = ssub.s32 1, %s3
  %s6 = scalar_select 0, %s5, %s3
  $region1: #{tpu_custom_call.1} parent=0
    #allocation2 [shape = 'u8[512]{0}', space=smem, size = 0x200, scoped, tag = 'input window, operand 0, single buffered']
    #allocation3 [shape = 's32[1]{0}', space=sflag, size = 0x4, scoped, tag = 'scoped memory for tpu_custom_call.1']
    #allocation4 [shape = 's32[1]{0}', space=sflag, size = 0x4, scoped, tag = 'scoped memory for tpu_custom_call.1']
    #allocation5 [shape = 's32[1]{0}', space=sflag, size = 0x4, scoped, tag = 'scoped memory for tpu_custom_call.1']
    #allocation6 [shape = 'u8[8192]{0}', space=vmem, size = 0x2000, scoped, tag = 'input window, operand 1, single buffered']
    #allocation7 [shape = 'u8[8192]{0}', space=vmem, size = 0x2000, scoped, tag = 'output window, operand 0, single buffered']
    %7 = vsyncpa [#allocation5], 0
    %8 = vsyncpa [#allocation3], 0
    %9 = vsyncpa [#allocation4], 0
    // Predicated region
    $region2: #{tpu_custom_call.1} parent=1 // pred_check
      _
    $region3: #{tpu_custom_call.1} parent=1 // pred_check_branch
      %11 = sbr.rel (0) target = $region5
    $region4: #{tpu_custom_call.1} parent=1 // pred_region
      %s13 = ssub.s32 16, 16
      %14 = vsyncadd [#allocation5], %s13
      %17 = dma.hbm_to_smem %s0, 16, [#allocation2], [#allocation5]
    $region5: #{tpu_custom_call.1} parent=1 // pred_fallthru
      _
    // Predicated region
    $region6: #{tpu_custom_call.1} parent=1 // pred_check
      _
    $region7: #{tpu_custom_call.1} parent=1 // pred_check_branch
      %19 = sbr.rel (0) target = $region9
    $region8: #{tpu_custom_call.1} parent=1 // pred_region
      %s21 = ssub.s32 256, 256
      %22 = vsyncadd [#allocation3], %s21
      %s24 = sshll.u32 [#allocation6], 4
      %s25 = int_to_ptr.vmem [resolvable:$true] %s24
      %27 = dma.hbm_to_vmem [thread:$0]  %s1, 256, %s25, [#allocation3]
    $region9: #{tpu_custom_call.1} parent=1 // pred_fallthru
      _
    // Predicated region
    $region10: #{tpu_custom_call.1} parent=1 // pred_check
      _
    $region11: #{tpu_custom_call.1} parent=1 // pred_check_branch
      %29 = sbr.rel (0) target = $region13
    $region12: #{tpu_custom_call.1} parent=1 // pred_region
      %30 = dma.done [#allocation5], 16
    $region13: #{tpu_custom_call.1} parent=1 // pred_fallthru
      _
    // Predicated region
    $region14: #{tpu_custom_call.1} parent=1 // pred_check
      _
    $region15: #{tpu_custom_call.1} parent=1 // pred_check_branch
      %32 = sbr.rel (0) target = $region17
    $region16: #{tpu_custom_call.1} parent=1 // pred_region
      %33 = dma.done [#allocation3], 256
    $region17: #{tpu_custom_call.1} parent=1 // pred_fallthru
      _
    %34 = sfence
    %s35 = sld [smem:[#allocation2]]
    %s36 = sld [smem:[#allocation2 + $0x1]]
    %s37 = sld [smem:[#allocation2 + $0x2]]
    %s38 = sld [smem:[#allocation2 + $0x3]]
    %s39 = sld [smem:[#allocation2 + $0x4]]
    %s40 = sld [smem:[#allocation2 + $0x5]]
    %s41 = sld [smem:[#allocation2 + $0x6]]
    %s42 = ssub.f32 0.0, %s40
    %v43 = vld [vmem:[#allocation6] sm:$0xff]
    %v44 = vld [vmem:[#allocation6 + $0x8] sm:$0xff]
    %v45 = vstv %s38
    %v46 = vsub.f32 %v43, %v45
    %v47 = vsub.f32 %v44, %v45
    %v48 = vstv %s36
    %v49 = vmul.f32 %v48, %v46
    %v50 = vmul.f32 %v48, %v47
    %v51 = vand.u32 2147483647, %v49
    %vm52 = vcmp.le.f32.partialorder %v51, 0.7853982
    %vm53 = vcmp.lt.s32.totalorder %v49, 0
    %v54 = vand.u32 %v49, 2139095040
    %v55 = vshrl.u32 %v54, 23
    %v56 = vsub.s32 %v55, 127
    %v57 = vand.u32 2147483647, %v49
    %v58 = vand.u32 %v57, 8388607
    %v59 = vor.u32 %v58, 8388608
    %v60 = vsub.s32 0, %v59
    %v61 = vadd.s32 %v56, 1
    %vm62 = vcmp.gt.s32.totalorder %v61, 0
    %v63 = vsel %vm62, %v61, 0
    %v64 = vshrl.u32 %v63, 5
    %v65 = vand.u32 %v63, 31
    %v66 = vsub.s32 32, %v65
    %v67 = vshrl.u32 683565275, %v66
    %v68 = vshll.u32 683565275, %v65
    %v69 = vshrl.u32 2475754826, %v66
    %v70 = vor.u32 %v68, %v69
    %v71 = vshll.u32 2475754826, %v65
    %v72 = vshrl.u32 2131351028, %v66
    %v73 = vor.u32 %v71, %v72
    %v74 = vshll.u32 2131351028, %v65
    %v75 = vshrl.u32 2102212464, %v66
    %v76 = vor.u32 %v74, %v75
    %v77 = vshll.u32 2102212464, %v65
    %v78 = vshrl.u32 920167782, %v66
    %v79 = vor.u32 %v77, %v78
    %v80 = vshll.u32 920167782, %v65
    %v81 = vshrl.u32 1326507024, %v66
    %v82 = vor.u32 %v80, %v81
    %vm83 = vcmp.lt.s32.totalorder %v64, 1
    %vm84 = vcmp.lt.s32.totalorder %v64, 2
    %vm85 = vcmp.lt.s32.totalorder %v64, 3
    %vm86 = vcmp.lt.s32.totalorder %v64, 4
    %v87 = vsel %vm83, %v67, %v70
    %v88 = vsel %vm86, %v76, 2102212464
    %v89 = vsel %vm85, %v73, %v88
    %v90 = vsel %vm84, %v87, %v89
    %v91 = vsel %vm83, %v70, %v73
    %v92 = vsel %vm86, %v79, 920167782
    %v93 = vsel %vm85, %v76, %v92
    %v94 = vsel %vm84, %v91, %v93
    %v95 = vsel %vm83, %v73, %v76
    %v96 = vsel %vm86, %v82, 1326507024
    %v97 = vsel %vm85, %v79, %v96
    %v98 = vsel %vm84, %v95, %v97
    %v99 = vshll.u32 %v59, 8
    %v100 = vmul.u32.u64.compose %v99, %v98
    %v101 = vextract.low.u32 %v100
    %v102 = vextract.high.u32 %v100
    %v103 = vmul.u32.u64.compose %v99, %v94
    %v104 = vextract.low.u32 %v103
    %v105 = vextract.high.u32 %v103
    %v106 = vmul.u32 %v99, %v90
    %v107 = vadd.s32 %v102, %v104
    %vm108 = vc.u32 %v102, %v104
    %v109 = vadd.s32 %v105, 1
    %v110 = vsel %vm108, %v109, %v105
    %v111 = vadd.s32 %v106, %v110
    %v112 = vadd.s32 %v111, 536870912
    %v113 = vshrl.u32 %v112, 30
    %v114 = vshll.u32 %v113, 30
    %v115 = vsub.s32 %v111, %v114
    %vm116 = vcmp.lt.s32.totalorder %v115, 0
    %v117 = vsub.s32 0, %v115
    %v118 = vsel %vm116, %v117, %v115
    %v119 = vclz %v118
    %v120 = vsub.s32 %v119, 2
    %vm121 = vcmp.gt.s32.totalorder 0, %v120
    %v122 = vsel %vm121, 0, %v120
    %v123 = vsub.s32 32, %v122
    %v124 = vshll.u32 %v115, %v122
    %v125 = vshrl.u32 %v107, %v123
    %v126 = vor.u32 %v124, %v125
    %v127 = vsub.s32 4294967266, %v122
    %v128 = vadd.s32 %v127, 127
    %v129 = vshll.u32 %v128, 23
    %v130 = vor.u32 4788187, %v129
    %v131 = vand.u32 2147483647, %v130
    %v133 = vcvt.s32.f32 %v126
    %v134 = vmul.f32 %v133, %v131
    %v135 = vxor.u32 %v134, 2147483648
    %v136 = vsel %vm53, %v135, %v134
    %v137 = vsub.s32 4, %v113
    %v138 = vsel %vm53, %v137, %v113
    %v139 = vsel %vm52, %v49, %v136
    %v140 = vsel %vm52, 0, %v138
    %v141 = vcosq.f32.pop %v139
    %v142 = vsinq.f32.pop %v139
    %vm143 = vweird.f32 %v49
    %v144 = vadd.s32 %v140, 3
    %v145 = vand.u32 %v144, 3
    %vm146 = vcmp.lt.s32.totalorder %v145, 2
    %vm147 = vcmp.eq.s32.totalorder %v145, 0
    %v148 = vxor.u32 %v142, 2147483648
    %v149 = vsel %vm147, %v141, %v148
    %vm150 = vcmp.eq.s32.totalorder %v145, 2
    %v151 = vxor.u32 %v141, 2147483648
    %v152 = vsel %vm150, %v151, %v142
    %v153 = vsel %vm146, %v149, %v152
    %v154 = vsel %vm143, nan, %v153
    %v155 = vand.u32 2147483647, %v50
    %vm156 = vcmp.le.f32.partialorder %v155, 0.7853982
    %vm157 = vcmp.lt.s32.totalorder %v50, 0
    %v158 = vand.u32 %v50, 2139095040
    %v159 = vshrl.u32 %v158, 23
    %v160 = vsub.s32 %v159, 127
    %v161 = vand.u32 2147483647, %v50
    %v162 = vand.u32 %v161, 8388607
    %v163 = vor.u32 %v162, 8388608
    %v164 = vsub.s32 0, %v163
    %v165 = vadd.s32 %v160, 1
    %vm166 = vcmp.gt.s32.totalorder %v165, 0
    %v167 = vsel %vm166, %v165, 0
    %v168 = vshrl.u32 %v167, 5
    %v169 = vand.u32 %v167, 31
    %v170 = vsub.s32 32, %v169
    %v171 = vshrl.u32 683565275, %v170
    %v172 = vshll.u32 683565275, %v169
    %v173 = vshrl.u32 2475754826, %v170
    %v174 = vor.u32 %v172, %v173
    %v175 = vshll.u32 2475754826, %v169
    %v176 = vshrl.u32 2131351028, %v170
    %v177 = vor.u32 %v175, %v176
    %v178 = vshll.u32 2131351028, %v169
    %v179 = vshrl.u32 2102212464, %v170
    %v180 = vor.u32 %v178, %v179
    %v181 = vshll.u32 2102212464, %v169
    %v182 = vshrl.u32 920167782, %v170
    %v183 = vor.u32 %v181, %v182
    %v184 = vshll.u32 920167782, %v169
    %v185 = vshrl.u32 1326507024, %v170
    %v186 = vor.u32 %v184, %v185
    %vm187 = vcmp.lt.s32.totalorder %v168, 1
    %vm188 = vcmp.lt.s32.totalorder %v168, 2
    %vm189 = vcmp.lt.s32.totalorder %v168, 3
    %vm190 = vcmp.lt.s32.totalorder %v168, 4
    %v191 = vsel %vm187, %v171, %v174
    %v192 = vsel %vm190, %v180, 2102212464
    %v193 = vsel %vm189, %v177, %v192
    %v194 = vsel %vm188, %v191, %v193
    %v195 = vsel %vm187, %v174, %v177
    %v196 = vsel %vm190, %v183, 920167782
    %v197 = vsel %vm189, %v180, %v196
    %v198 = vsel %vm188, %v195, %v197
    %v199 = vsel %vm187, %v177, %v180
    %v200 = vsel %vm190, %v186, 1326507024
    %v201 = vsel %vm189, %v183, %v200
    %v202 = vsel %vm188, %v199, %v201
    %v203 = vshll.u32 %v163, 8
    %v204 = vmul.u32.u64.compose %v203, %v202
    %v205 = vextract.low.u32 %v204
    %v206 = vextract.high.u32 %v204
    %v207 = vmul.u32.u64.compose %v203, %v198
    %v208 = vextract.low.u32 %v207
    %v209 = vextract.high.u32 %v207
    %v210 = vmul.u32 %v203, %v194
    %v211 = vadd.s32 %v206, %v208
    %vm212 = vc.u32 %v206, %v208
    %v213 = vadd.s32 %v209, 1
    %v214 = vsel %vm212, %v213, %v209
    %v215 = vadd.s32 %v210, %v214
    %v216 = vadd.s32 %v215, 536870912
    %v217 = vshrl.u32 %v216, 30
    %v218 = vshll.u32 %v217, 30
    %v219 = vsub.s32 %v215, %v218
    %vm220 = vcmp.lt.s32.totalorder %v219, 0
    %v221 = vsub.s32 0, %v219
    %v222 = vsel %vm220, %v221, %v219
    %v223 = vclz %v222
    %v224 = vsub.s32 %v223, 2
    %vm225 = vcmp.gt.s32.totalorder 0, %v224
    %v226 = vsel %vm225, 0, %v224
    %v227 = vsub.s32 32, %v226
    %v228 = vshll.u32 %v219, %v226
    %v229 = vshrl.u32 %v211, %v227
    %v230 = vor.u32 %v228, %v229
    %v231 = vsub.s32 4294967266, %v226
    %v232 = vadd.s32 %v231, 127
    %v233 = vshll.u32 %v232, 23
    %v234 = vor.u32 4788187, %v233
    %v235 = vand.u32 2147483647, %v234
    %v237 = vcvt.s32.f32 %v230
    %v238 = vmul.f32 %v237, %v235
    %v239 = vxor.u32 %v238, 2147483648
    %v240 = vsel %vm157, %v239, %v238
    %v241 = vsub.s32 4, %v217
    %v242 = vsel %vm157, %v241, %v217
    %v243 = vsel %vm156, %v50, %v240
    %v244 = vsel %vm156, 0, %v242
    %v245 = vcosq.f32.pop %v243
    %v246 = vsinq.f32.pop %v243
    %vm247 = vweird.f32 %v50
    %v248 = vadd.s32 %v244, 3
    %v249 = vand.u32 %v248, 3
    %vm250 = vcmp.lt.s32.totalorder %v249, 2
    %vm251 = vcmp.eq.s32.totalorder %v249, 0
    %v252 = vxor.u32 %v246, 2147483648
    %v253 = vsel %vm251, %v245, %v252
    %vm254 = vcmp.eq.s32.totalorder %v249, 2
    %v255 = vxor.u32 %v245, 2147483648
    %v256 = vsel %vm254, %v255, %v246
    %v257 = vsel %vm250, %v253, %v256
    %v258 = vsel %vm247, nan, %v257
    %v259 = vstv %s35
    %v260 = vmul.f32 %v259, %v154
    %v261 = vmul.f32 %v259, %v258
    %v262 = vstv %s39
    %v263 = vsub.f32 %v43, %v262
    %v264 = vsub.f32 %v44, %v262
    %v265 = vand.u32 2147483647, %v263
    %v266 = vand.u32 2147483647, %v264
    %v267 = vstv %s42
    %v268 = vmul.f32 %v267, %v265
    %v269 = vmul.f32 %v267, %v266
    %v270 = vmul.f32 %v268, 1.442695
    %v271 = vpow.pop %v270
    %v272 = vmul.f32 %v269, 1.442695
    %v273 = vpow.pop %v272
    %v274 = vmul.f32 %v260, %v271
    %v275 = vmul.f32 %v261, %v273
    %v276 = vstv %s37
    %v277 = vmul.f32 %v276, %v43
    %v278 = vmul.f32 %v276, %v44
    %v279 = vadd.f32 %v274, %v277
    %v280 = vadd.f32 %v275, %v278
    %v281 = vstv %s41
    %v282 = vadd.f32 %v279, %v281
    %v283 = vadd.f32 %v280, %v281
    %284 = vst [vmem:[#allocation7] sm:$0xff] %v282
    %285 = vst [vmem:[#allocation7 + $0x8] sm:$0xff] %v283
    // Predicated region
    $region18: #{tpu_custom_call.1} parent=1 // pred_check
      _
    $region19: #{tpu_custom_call.1} parent=1 // pred_check_branch
      %287 = sbr.rel (0) target = $region21
    $region20: #{tpu_custom_call.1} parent=1 // pred_region
      %s289 = ssub.s32 256, 256
      %290 = vsyncadd [#allocation4], %s289
      %s292 = sshll.u32 [#allocation7], 4
      %s293 = int_to_ptr.vmem [resolvable:$true] %s292
      %295 = dma.vmem_to_hbm [thread:$0]  %s293, 256, %s2, [#allocation4]
    $region21: #{tpu_custom_call.1} parent=1 // pred_fallthru
      _
    // Predicated region
    $region22: #{tpu_custom_call.1} parent=1 // pred_check
      _
    $region23: #{tpu_custom_call.1} parent=1 // pred_check_branch
      %297 = sbr.rel (0) target = $region25
    $region24: #{tpu_custom_call.1} parent=1 // pred_region
      %298 = dma.done [#allocation4], 256
    $region25: #{tpu_custom_call.1} parent=1 // pred_fallthru
      _
    %299 = vsyncpa [#allocation3], 1
    %300 = vsyncpa [#allocation4], 1
    %301 = vsyncpa [#allocation5], 1

</llo_original>
